<compile_context>
chip_gen: v6e
topology: v6e:2x2x1
jax: 0.10.0
libtpu: 0.0.40
codegen_flags: <defaults>
</compile_context>

<pallas_src>
import functools
import math

import jax
import jax.numpy as jnp
from jax import lax
from jax.experimental import pallas as pl
from jax.experimental.pallas import tpu as pltpu

ALPHA = 0.25
GAMMA = 0.5          # kernel uses the sqrt fast path — keep this assert:
assert GAMMA == 0.5, "kernel hard-codes pow(x, 0.5) == sqrt(x)"
MIN_CLAMP = 1e-05

LANES = 128
MAX_TILE_ROWS = 2048          # 2048*128*4B = 1 MiB per f32 input block
SMALL_N_FASTPATH = 32 * 1024  # below this, plain fused XLA beats a launch


def _round_up(x, m):
    return ((x + m - 1) // m) * m


def _focal_elementwise(p, t):
    """Per-element focal loss in f32 (used by fast path / tail correction)."""
    p = p.astype(jnp.float32)
    t = t.astype(jnp.float32)
    p_t = jnp.where(t > 0.5, p, 1.0 - p)
    p_t = jnp.clip(p_t, MIN_CLAMP, 1.0 - MIN_CLAMP)
    a_t = jnp.where(t > 0.5, jnp.float32(ALPHA), jnp.float32(1.0 - ALPHA))
    return -a_t * jnp.sqrt(1.0 - p_t) * jnp.log(p_t)


def _focal_loss_kernel(pred_ref, target_ref, out_ref, *, tile_rows,
                       valid_rows_last):
    """One grid block: focal loss over a (tile_rows, 128) tile, emitting a
    lane-dense (1, 128) partial sum."""
    p = pred_ref[...].astype(jnp.float32)      # (tile_rows, 128)
    t = target_ref[...].astype(jnp.float32)    # (tile_rows, 128), 0/1

    # p_t = p if target == 1 else (1 - p)  (== the scatter/one-hot selection).
    p_t = jnp.where(t > 0.5, p, 1.0 - p)
    # Both clamps are kept: the lower protects log, the upper protects sqrt
    # (and matches the PyTorch clamp(min, max) semantics exactly).
    p_t = jnp.clip(p_t, MIN_CLAMP, 1.0 - MIN_CLAMP)

    # -alpha_t folded into one mul+add: t in {0,1} -> -0.25 / -0.75.
    neg_alpha = 0.5 * t - 0.75
    # gamma == 0.5: sqrt is a single EUP op (vs exp(g*log(x)) for pow).
    loss = neg_alpha * jnp.sqrt(1.0 - p_t) * jnp.log(p_t)

    ones = jnp.ones((1, tile_rows), jnp.float32)

    def row_sum(x):
        # Axis-0 reduce on the (otherwise idle) MXU instead of the VPU;
        # HIGHEST precision keeps the f32 accumulation f32-accurate.
        return jnp.dot(ones, x, precision=lax.Precision.HIGHEST,
                       preferred_element_type=jnp.float32)   # (1, 128)

    if valid_rows_last == tile_rows:
        # Static: every block (incl. the last) is fully valid — one path.
        out_ref[0] = row_sum(loss)
    else:
        i = pl.program_id(0)
        last = pl.num_programs(0) - 1

        # Steady-state blocks: no masking, pure VALU/EUP/MXU path.
        @pl.when(i < last)
        def _():
            out_ref[0] = row_sum(loss)

        # Last block is partial: rows >= valid_rows_last are the undefined
        # out-of-bounds tail.  Mask with a SELECT (not multiply) so garbage
        # NaN/Inf in the tail can never propagate into the sum.
        @pl.when(i == last)
        def _():
            row_iota = lax.broadcasted_iota(jnp.int32, (tile_rows, LANES), 0)
            masked = jnp.where(row_iota < valid_rows_last, loss, 0.0)
            out_ref[0] = row_sum(masked)


def focal_loss(pred, target, *, force_pallas=False):
    """Pallas TPU implementation of FocalLoss.forward. Returns a scalar f32.

    `target` may be any dtype encoding {0, 1} (f32 / bf16 / int8 / bool);
    it is upcast inside the kernel, so narrow dtypes save HBM traffic.
    """
    n = math.prod(pred.shape)
    if n == 0:
        return jnp.float32(jnp.nan)  # mean over an empty tensor

    pred_flat = pred.reshape(-1)
    target_flat = target.reshape(-1)
    rows = n // LANES

    # Small-n fast path: launch overhead dominates; a fused XLA
    # elementwise+reduce is faster and avoids per-shape recompiles.
    if (not force_pallas and n < SMALL_N_FASTPATH) or rows == 0:
        return jnp.mean(_focal_elementwise(pred_flat, target_flat))

    n_main = rows * LANES
    tail = n - n_main

    if tail:
        # Sub-128 remainder handled as a tiny correction instead of padding
        # (padding would re-materialize BOTH full inputs before the kernel).
        tail_sum = jnp.sum(
            _focal_elementwise(pred_flat[n_main:], target_flat[n_main:]))
        pred_main = pred_flat[:n_main]
        target_main = target_flat[:n_main]
    else:
        tail_sum = None
        pred_main = pred_flat      # no-copy reshape below
        target_main = target_flat

    pred2d = pred_main.reshape(rows, LANES)
    target2d = target_main.reshape(rows, LANES)

    # Tile selection: balance rows across >= 2 blocks (v7x megacore sharding),
    # round to 32 rows (f32/bf16/int8 sublane packing), cap at MAX_TILE_ROWS.
    blocks = max(2, pl.cdiv(rows, MAX_TILE_ROWS))
    tile_rows = min(MAX_TILE_ROWS, _round_up(pl.cdiv(rows, blocks), 32))
    if tile_rows >= rows:
        tile_rows = rows           # block == full dim (exempt from 8-row rule)
    g = pl.cdiv(rows, tile_rows)
    valid_rows_last = rows - (g - 1) * tile_rows   # rows valid in last block

    kernel = functools.partial(_focal_loss_kernel, tile_rows=tile_rows,
                               valid_rows_last=valid_rows_last)

    partials = pl.pallas_call(
        kernel,
        out_shape=jax.ShapeDtypeStruct((g, 1, LANES), jnp.float32),
        grid_spec=pltpu.PrefetchScalarGridSpec(
            num_scalar_prefetch=0,
            grid=(g,),
            in_specs=[
                pl.BlockSpec((tile_rows, LANES), lambda i: (i, 0)),
                pl.BlockSpec((tile_rows, LANES), lambda i: (i, 0)),
            ],
            out_specs=pl.BlockSpec((1, 1, LANES), lambda i: (i, 0, 0)),
        ),
        compiler_params=pltpu.CompilerParams(
            dimension_semantics=("parallel",),
            vmem_limit_bytes=32 * 1024 * 1024,
        ),
    )(pred2d, target2d)

    total = jnp.sum(partials)
    if tail:
        total = total + tail_sum
    return total / jnp.float32(n)


def focal_loss_ref(pred, target):
    """Plain-JAX reference mirroring the PyTorch module."""
    p = pred.reshape(-1).astype(jnp.float32)
    t = target.reshape(-1).astype(jnp.float32)
    p_t = jnp.where(t > 0.5, p, 1.0 - p)
    p_t = jnp.clip(p_t, MIN_CLAMP, 1.0 - MIN_CLAMP)
    a_t = jnp.where(t > 0.5, ALPHA, 1.0 - ALPHA)
    loss = -a_t * jnp.power(1.0 - p_t, GAMMA) * jnp.log(p_t)
    return jnp.mean(loss)


if __name__ == "__main__":
    key = jax.random.PRNGKey(0)
    kp1, kt1, kp2, kt2 = jax.random.split(key, 4)

    # Case 1: NCHW sigmoid-style probabilities, n = 2048 (multiple of 128)
    # -> single full block, unmasked kernel path.
    pred1 = jax.random.uniform(kp1, (2, 4, 16, 16), dtype=jnp.float32,
                               minval=1e-4, maxval=1.0 - 1e-4)
    target1 = (jax.random.uniform(kt1, (2, 4, 16, 16)) > 0.5).astype(jnp.float32)
    out1 = jax.block_until_ready(focal_loss(pred1, target1, force_pallas=True))
    ref1 = focal_loss_ref(pred1, target1)
    assert jnp.allclose(out1, ref1, rtol=1e-5, atol=1e-6), (out1, ref1)

    # Case 2: odd shape (n = 9102, n % 128 != 0) with a narrow (bf16) target
    # -> 2 parallel blocks, partial last block mask, sub-128 tail correction.
    pred2 = jax.random.uniform(kp2, (2, 3, 37, 41), dtype=jnp.float32,
                               minval=1e-4, maxval=1.0 - 1e-4)
    target2 = (jax.random.uniform(kt2, (2, 3, 37, 41)) > 0.5).astype(jnp.bfloat16)
    out2 = jax.block_until_ready(focal_loss(pred2, target2, force_pallas=True))
    ref2 = focal_loss_ref(pred2, target2)
    assert jnp.allclose(out2, ref2, rtol=1e-5, atol=1e-6), (out2, ref2)

    # Case 3: default small-n fast path (no pallas_call) stays correct.
    out3 = jax.block_until_ready(focal_loss(pred1, target1))
    assert jnp.allclose(out3, ref1, rtol=1e-5, atol=1e-6), (out3, ref1)

    print("KERNEL_OK")
</pallas_src>

<mosaic_0001>
module attributes {stable_mosaic.version = 11 : i64} {
  func.func @_focal_loss_kernel(%arg0: i32, %arg1: memref<16x128xf32, #tpu.memory_space<vmem>>, %arg2: memref<16x128xf32, #tpu.memory_space<vmem>>, %arg3: memref<1x1x128xf32, #tpu.memory_space<vmem>>) attributes {dimension_semantics = [#tpu.dimension_semantics<parallel>], iteration_bounds = array<i64: 1>, scalar_prefetch = 0 : i64, scratch_operands = 0 : i64, tpu.core_type = #tpu.core_type<tc>, window_params = [{transform_indices = @transform_0, window_bounds = array<i64: 16, 128>}, {transform_indices = @transform_1, window_bounds = array<i64: 16, 128>}, {transform_indices = @transform_2, window_bounds = array<i64: 1, 1, 128>}]} {
    %c0 = arith.constant 0 : index
    %c0_0 = arith.constant 0 : index
    %0 = vector.load %arg1[%c0, %c0_0] : memref<16x128xf32, #tpu.memory_space<vmem>>, vector<16x128xf32>
    %c0_1 = arith.constant 0 : index
    %c0_2 = arith.constant 0 : index
    %1 = vector.load %arg2[%c0_1, %c0_2] : memref<16x128xf32, #tpu.memory_space<vmem>>, vector<16x128xf32>
    %cst = arith.constant 5.000000e-01 : f32
    %2 = vector.broadcast %cst : f32 to vector<16x128xf32>
    %3 = arith.cmpf ogt, %1, %2 : vector<16x128xf32>
    %cst_3 = arith.constant 1.000000e+00 : f32
    %4 = vector.broadcast %cst_3 : f32 to vector<16x128xf32>
    %5 = arith.subf %4, %0 : vector<16x128xf32>
    %6 = arith.select %3, %0, %5 : vector<16x128xi1>, vector<16x128xf32>
    %cst_4 = arith.constant 9.99999974E-6 : f32
    %cst_5 = arith.constant 0.999989986 : f32
    %7 = vector.broadcast %cst_4 : f32 to vector<16x128xf32>
    %8 = arith.maximumf %7, %6 : vector<16x128xf32>
    %9 = vector.broadcast %cst_5 : f32 to vector<16x128xf32>
    %10 = arith.minimumf %9, %8 : vector<16x128xf32>
    %cst_6 = arith.constant 5.000000e-01 : f32
    %11 = vector.broadcast %cst_6 : f32 to vector<16x128xf32>
    %12 = arith.mulf %11, %1 : vector<16x128xf32>
    %cst_7 = arith.constant 7.500000e-01 : f32
    %13 = vector.broadcast %cst_7 : f32 to vector<16x128xf32>
    %14 = arith.subf %12, %13 : vector<16x128xf32>
    %cst_8 = arith.constant 1.000000e+00 : f32
    %15 = vector.broadcast %cst_8 : f32 to vector<16x128xf32>
    %16 = arith.subf %15, %10 : vector<16x128xf32>
    %17 = math.sqrt %16 : vector<16x128xf32>
    %18 = arith.mulf %14, %17 : vector<16x128xf32>
    %19 = math.log %10 : vector<16x128xf32>
    %20 = arith.mulf %18, %19 : vector<16x128xf32>
    %cst_9 = arith.constant 1.000000e+00 : f32
    %21 = vector.broadcast %cst_9 : f32 to vector<1x16xf32>
    %cst_10 = arith.constant dense<0.000000e+00> : vector<1x128xf32>
    %22 = tpu.matmul %21, %20, %cst_10 {dimension_numbers = #tpu.dot_dimension_numbers<[1], [0], [0], [1], [0, 0, 1, 1], [], []>, precision = #tpu.contract_precision<fp32>} : vector<1x16xf32>, vector<16x128xf32>, vector<1x128xf32> -> vector<1x128xf32>
    %c0_11 = arith.constant 0 : index
    %c0_12 = arith.constant 0 : index
    %c0_13 = arith.constant 0 : index
    %23 = vector.load %arg3[%c0_11, %c0_12, %c0_13] : memref<1x1x128xf32, #tpu.memory_space<vmem>>, vector<1x1x128xf32>
    %24 = vector.shape_cast %23 : vector<1x1x128xf32> to vector<1x128xf32>
    %25 = vector.shape_cast %22 : vector<1x128xf32> to vector<1x1x128xf32>
    tpu.vector_store %arg3[%c0_11, %c0_12, %c0_13], %25 {strides = array<i32>} : memref<1x1x128xf32, #tpu.memory_space<vmem>>, vector<1x1x128xf32>,
    return
  }
  func.func @transform_0(%arg0: i32) -> (i32, i32) {
    %c0_i32 = arith.constant 0 : i32
    %c0_i32_0 = arith.constant 0 : i32
    return %arg0, %c0_i32 : i32, i32
  }
  func.func @transform_1(%arg0: i32) -> (i32, i32) {
    %c0_i32 = arith.constant 0 : i32
    %c0_i32_0 = arith.constant 0 : i32
    return %arg0, %c0_i32 : i32, i32
  }
  func.func @transform_2(%arg0: i32) -> (i32, i32, i32) {
    %c0_i32 = arith.constant 0 : i32
    %c0_i32_0 = arith.constant 0 : i32
    %c0_i32_1 = arith.constant 0 : i32
    return %arg0, %c0_i32, %c0_i32_0 : i32, i32, i32
  }
}

</mosaic_0001>

<llo_original>
// kernel: tpu_custom_call.1
$region0: #{tpu_custom_call.1}
  #allocation0 [shape = 'u32[]', space=smem, size = 0x4, offset = 0x4, fixed_abs, tag = 'smem constant byte address 0x4 - core index']
  #allocation1 [shape = 'u32[144,128]{1,0:T(1,128)}', space=vmem, size = 0x12000, scoped, tag = 'internal scratch']
  %s0 = inlined_call_operand.hbm [shape: f32[16,128], index: 0, kind: input, shape index: {}]
  %s1 = inlined_call_operand.hbm [shape: f32[16,128], index: 1, kind: input, shape index: {}]
  %s2 = inlined_call_operand.hbm [shape: f32[1,1,128], index: 2, kind: output, shape index: {}]
  %s3 = sld [smem:[#allocation0]]
  $region26: #{tpu_custom_call.1} parent=0
    _
  %s5 = ssub.s32 1, %s3
  %s6 = scalar_select 0, %s5, %s3
  $region1: #{tpu_custom_call.1} parent=0
    #allocation2 [shape = 'u8[8192]{0}', space=vmem, size = 0x2000, scoped, tag = 'input window, operand 0, single buffered']
    #allocation3 [shape = 's32[1]{0}', space=sflag, size = 0x4, scoped, tag = 'scoped memory for tpu_custom_call.1']
    #allocation4 [shape = 's32[1]{0}', space=sflag, size = 0x4, scoped, tag = 'scoped memory for tpu_custom_call.1']
    #allocation5 [shape = 'u8[8192]{0}', space=vmem, size = 0x2000, scoped, tag = 'input window, operand 1, single buffered']
    #allocation6 [shape = 's32[1]{0}', space=sflag, size = 0x4, scoped, tag = 'scoped memory for tpu_custom_call.1']
    #allocation7 [shape = 'u8[512]{0}', space=vmem, size = 0x400, scoped, tag = 'output window, operand 0, single buffered']
    %7 = vsyncpa [#allocation3], 0
    %8 = vsyncpa [#allocation6], 0
    %9 = vsyncpa [#allocation4], 0
    // Predicated region
    $region2: #{tpu_custom_call.1} parent=1 // pred_check
      _
    $region3: #{tpu_custom_call.1} parent=1 // pred_check_branch
      %11 = sbr.rel (0) target = $region5
    $region4: #{tpu_custom_call.1} parent=1 // pred_region
      %s13 = ssub.s32 256, 256
      %14 = vsyncadd [#allocation3], %s13
      %s15 = sshll.u32 [#allocation2], 4
      %s16 = int_to_ptr.vmem [resolvable:$true] %s15
      %21 = dma.hbm_to_vmem [thread:$0]  %s0, 256, %s16, [#allocation3], 128, 128, 8
    $region5: #{tpu_custom_call.1} parent=1 // pred_fallthru
      _
    // Predicated region
    $region6: #{tpu_custom_call.1} parent=1 // pred_check
      _
    $region7: #{tpu_custom_call.1} parent=1 // pred_check_branch
      %23 = sbr.rel (0) target = $region9
    $region8: #{tpu_custom_call.1} parent=1 // pred_region
      %s25 = ssub.s32 256, 256
      %26 = vsyncadd [#allocation6], %s25
      %s27 = sshll.u32 [#allocation5], 4
      %s28 = int_to_ptr.vmem [resolvable:$true] %s27
      %33 = dma.hbm_to_vmem [thread:$0]  %s1, 256, %s28, [#allocation6], 128, 128, 8
    $region9: #{tpu_custom_call.1} parent=1 // pred_fallthru
      _
    // Predicated region
    $region10: #{tpu_custom_call.1} parent=1 // pred_check
      _
    $region11: #{tpu_custom_call.1} parent=1 // pred_check_branch
      %35 = sbr.rel (0) target = $region13
    $region12: #{tpu_custom_call.1} parent=1 // pred_region
      %36 = dma.done [#allocation3], 256
    $region13: #{tpu_custom_call.1} parent=1 // pred_fallthru
      _
    // Predicated region
    $region14: #{tpu_custom_call.1} parent=1 // pred_check
      _
    $region15: #{tpu_custom_call.1} parent=1 // pred_check_branch
      %38 = sbr.rel (0) target = $region17
    $region16: #{tpu_custom_call.1} parent=1 // pred_region
      %39 = dma.done [#allocation6], 256
    $region17: #{tpu_custom_call.1} parent=1 // pred_fallthru
      _
    %v40 = vld [vmem:[#allocation2] sm:$0xff]
    %v41 = vld [vmem:[#allocation2 + $0x8] sm:$0xff]
    %v42 = vld [vmem:[#allocation5] sm:$0xff]
    %v43 = vld [vmem:[#allocation5 + $0x8] sm:$0xff]
    %vm44 = vcmp.gt.f32.partialorder %v42, 0.5
    %vm45 = vcmp.gt.f32.partialorder %v43, 0.5
    %v46 = vsub.f32 1.0, %v40
    %v47 = vsub.f32 1.0, %v41
    %v48 = vsel %vm44, %v40, %v46
    %v49 = vsel %vm45, %v41, %v47
    %v50 = vmax.f32 %v48, 1e-05
    %v51 = vmax.f32 %v49, 1e-05
    %v52 = vmin.f32 %v50, 0.99999
    %v53 = vmin.f32 %v51, 0.99999
    %v54 = vmul.f32 %v42, 0.5
    %v55 = vmul.f32 %v43, 0.5
    %v56 = vsub.f32 %v54, 0.75
    %v57 = vsub.f32 %v55, 0.75
    %v58 = vsub.f32 1.0, %v52
    %v59 = vsub.f32 1.0, %v53
    %v60 = vrsqrt.pop %v58
    %v61 = vmul.f32 %v58, %v60
    %vm62 = vcmp.eq.f32.partialorder %v58, inf
    %v63 = vsel %vm62, %v58, %v61
    %vm64 = vcmp.eq.f32.partialorder %v58, 0.0
    %v65 = vand.u32 %v58, 2147483648
    %v66 = vsel %vm64, %v65, %v63
    %v67 = vrsqrt.pop %v59
    %v68 = vmul.f32 %v59, %v67
    %vm69 = vcmp.eq.f32.partialorder %v59, inf
    %v70 = vsel %vm69, %v59, %v68
    %vm71 = vcmp.eq.f32.partialorder %v59, 0.0
    %v72 = vand.u32 %v59, 2147483648
    %v73 = vsel %vm71, %v72, %v70
    %v74 = vmul.f32 %v56, %v66
    %v75 = vmul.f32 %v57, %v73
    %v76 = vlog2.pop %v52
    %v77 = vmul.f32 %v76, 0.6931472
    %v78 = vlog2.pop %v53
    %v79 = vmul.f32 %v78, 0.6931472
    %v80 = vmul.f32 %v74, %v77
    %v81 = vmul.f32 %v75, %v79
    %vm82 = vcmask 130048
    %v84 = vsel %vm82, 1.0, 0
    %86 = vmatprep.subr.mxu0 0.0
    %87 = vmatpush1.msra.mxu0 0.0
    %88 = vmatprep.subr.mxu0 0.0
    %89 = vmatpush1.msra.mxu0 0.0
    %90 = vmatprep.subr.mxu0 0.0
    %91 = vmatpush1.msra.mxu0 0.0
    %92 = vmatprep.subr.mxu0 0.0
    %93 = vmatpush1.msra.mxu0 0.0
    %94 = vmatprep.subr.mxu0 0.0
    %95 = vmatpush1.msra.mxu0 0.0
    %96 = vmatprep.subr.mxu0 0.0
    %97 = vmatpush1.msra.mxu0 0.0
    %98 = vmatprep.subr.mxu0 0.0
    %99 = vmatpush1.msra.mxu0 0.0
    %100 = vmatprep.subr.mxu0 0.0
    %101 = vmatpush1.msra.mxu0 0.0
    %102 = vmatprep.subr.mxu0 0.0
    %103 = vmatpush1.msra.mxu0 0.0
    %104 = vmatprep.subr.mxu0 0.0
    %105 = vmatpush1.msra.mxu0 0.0
    %106 = vmatprep.subr.mxu0 0.0
    %107 = vmatpush1.msra.mxu0 0.0
    %108 = vmatprep.subr.mxu0 0.0
    %109 = vmatpush1.msra.mxu0 0.0
    %110 = vmatprep.subr.mxu0 0.0
    %111 = vmatpush1.msra.mxu0 0.0
    %112 = vmatprep.subr.mxu0 0.0
    %113 = vmatpush1.msra.mxu0 0.0
    %114 = vmatprep.subr.mxu0 0.0
    %v115 = vand.u32 %v81, 4294901760
    %116 = vmatpush1.msra.mxu0 %v115
    %117 = vmatprep.subr.mxu0 0.0
    %v118 = vand.u32 %v80, 4294901760
    %119 = vmatpush1.msra.mxu0 %v118
    %120 = vmatprep.subr.mxu0 0.0
    %121 = vmatpush2.msra.mxu0 0.0
    %122 = vmatprep.subr.mxu0 0.0
    %123 = vmatpush2.msra.mxu0 0.0
    %124 = vmatprep.subr.mxu0 0.0
    %125 = vmatpush2.msra.mxu0 0.0
    %126 = vmatprep.subr.mxu0 0.0
    %127 = vmatpush2.msra.mxu0 0.0
    %128 = vmatprep.subr.mxu0 0.0
    %129 = vmatpush2.msra.mxu0 0.0
    %130 = vmatprep.subr.mxu0 0.0
    %131 = vmatpush2.msra.mxu0 0.0
    %132 = vmatprep.subr.mxu0 0.0
    %133 = vmatpush2.msra.mxu0 0.0
    %134 = vmatprep.subr.mxu0 0.0
    %135 = vmatpush2.msra.mxu0 0.0
    %136 = vmatprep.subr.mxu0 0.0
    %137 = vmatpush2.msra.mxu0 0.0
    %138 = vmatprep.subr.mxu0 0.0
    %139 = vmatpush2.msra.mxu0 0.0
    %140 = vmatprep.subr.mxu0 0.0
    %141 = vmatpush2.msra.mxu0 0.0
    %142 = vmatprep.subr.mxu0 0.0
    %143 = vmatpush2.msra.mxu0 0.0
    %144 = vmatprep.subr.mxu0 0.0
    %145 = vmatpush2.msra.mxu0 0.0
    %146 = vmatprep.subr.mxu0 0.0
    %147 = vmatpush2.msra.mxu0 0.0
    %148 = vmatprep.subr.mxu0 0.0
    %149 = vmatpush2.msra.mxu0 0.0
    %150 = vmatprep.subr.mxu0 0.0
    %151 = vmatpush2.msra.mxu0 0.0
    %152 = vmatprep.mubr.f32.mxu0 0.0
    %v153 = vand.u32 %v84, 4294901760
    %v154 = vsub.f32 %v84, %v153
    %v155 = vand.u32 %v154, 4294901760
    %v156 = vsub.f32 %v154, %v155
    %v157 = vand.u32 %v156, 4294901760
    %158 = vmatmul.mubr.f32.gmra.mxu0 %v157
    %v159 = vpop.f32.mrf.mxu0
    %v160 = vadd.f32 0.0, %v159
    %v161 = vpop.f32.mrf.mxu0
    %162 = vdwg.mxu0
    %163 = vmatprep.subr.mxu0 0.0
    %164 = vmatpush1.msra.mxu0 0.0
    %165 = vmatprep.subr.mxu0 0.0
    %166 = vmatpush1.msra.mxu0 0.0
    %167 = vmatprep.subr.mxu0 0.0
    %168 = vmatpush1.msra.mxu0 0.0
    %169 = vmatprep.subr.mxu0 0.0
    %170 = vmatpush1.msra.mxu0 0.0
    %171 = vmatprep.subr.mxu0 0.0
    %172 = vmatpush1.msra.mxu0 0.0
    %173 = vmatprep.subr.mxu0 0.0
    %174 = vmatpush1.msra.mxu0 0.0
    %175 = vmatprep.subr.mxu0 0.0
    %176 = vmatpush1.msra.mxu0 0.0
    %177 = vmatprep.subr.mxu0 0.0
    %178 = vmatpush1.msra.mxu0 0.0
    %179 = vmatprep.subr.mxu0 0.0
    %180 = vmatpush1.msra.mxu0 0.0
    %181 = vmatprep.subr.mxu0 0.0
    %182 = vmatpush1.msra.mxu0 0.0
    %183 = vmatprep.subr.mxu0 0.0
    %184 = vmatpush1.msra.mxu0 0.0
    %185 = vmatprep.subr.mxu0 0.0
    %186 = vmatpush1.msra.mxu0 0.0
    %187 = vmatprep.subr.mxu0 0.0
    %188 = vmatpush1.msra.mxu0 0.0
    %189 = vmatprep.subr.mxu0 0.0
    %190 = vmatpush1.msra.mxu0 0.0
    %191 = vmatprep.subr.mxu0 0.0
    %v192 = vand.u32 %v81, 4294901760
    %v193 = vsub.f32 %v81, %v192
    %v194 = vand.u32 %v193, 4294901760
    %v195 = vsub.f32 %v193, %v194
    %v196 = vand.u32 %v195, 4294901760
    %197 = vmatpush1.msra.mxu0 %v196
    %198 = vmatprep.subr.mxu0 0.0
    %v199 = vand.u32 %v80, 4294901760
    %v200 = vsub.f32 %v80, %v199
    %v201 = vand.u32 %v200, 4294901760
    %v202 = vsub.f32 %v200, %v201
    %v203 = vand.u32 %v202, 4294901760
    %204 = vmatpush1.msra.mxu0 %v203
    %205 = vmatprep.subr.mxu0 0.0
    %206 = vmatpush2.msra.mxu0 0.0
    %207 = vmatprep.subr.mxu0 0.0
    %208 = vmatpush2.msra.mxu0 0.0
    %209 = vmatprep.subr.mxu0 0.0
    %210 = vmatpush2.msra.mxu0 0.0
    %211 = vmatprep.subr.mxu0 0.0
    %212 = vmatpush2.msra.mxu0 0.0
    %213 = vmatprep.subr.mxu0 0.0
    %214 = vmatpush2.msra.mxu0 0.0
    %215 = vmatprep.subr.mxu0 0.0
    %216 = vmatpush2.msra.mxu0 0.0
    %217 = vmatprep.subr.mxu0 0.0
    %218 = vmatpush2.msra.mxu0 0.0
    %219 = vmatprep.subr.mxu0 0.0
    %220 = vmatpush2.msra.mxu0 0.0
    %221 = vmatprep.subr.mxu0 0.0
    %222 = vmatpush2.msra.mxu0 0.0
    %223 = vmatprep.subr.mxu0 0.0
    %224 = vmatpush2.msra.mxu0 0.0
    %225 = vmatprep.subr.mxu0 0.0
    %226 = vmatpush2.msra.mxu0 0.0
    %227 = vmatprep.subr.mxu0 0.0
    %228 = vmatpush2.msra.mxu0 0.0
    %229 = vmatprep.subr.mxu0 0.0
    %230 = vmatpush2.msra.mxu0 0.0
    %231 = vmatprep.subr.mxu0 0.0
    %232 = vmatpush2.msra.mxu0 0.0
    %233 = vmatprep.subr.mxu0 0.0
    %234 = vmatpush2.msra.mxu0 0.0
    %235 = vmatprep.subr.mxu0 0.0
    %236 = vmatpush2.msra.mxu0 0.0
    %237 = vmatprep.mubr.f32.mxu0 0.0
    %v238 = vand.u32 %v84, 4294901760
    %239 = vmatmul.mubr.f32.gmra.mxu0 %v238
    %v240 = vpop.f32.mrf.mxu0
    %v241 = vadd.f32 %v160, %v240
    %v242 = vpop.f32.mrf.mxu0
    %243 = vdwg.mxu0
    %244 = vmatprep.subr.mxu0 0.0
    %245 = vmatpush1.msra.mxu0 0.0
    %246 = vmatprep.subr.mxu0 0.0
    %247 = vmatpush1.msra.mxu0 0.0
    %248 = vmatprep.subr.mxu0 0.0
    %249 = vmatpush1.msra.mxu0 0.0
    %250 = vmatprep.subr.mxu0 0.0
    %251 = vmatpush1.msra.mxu0 0.0
    %252 = vmatprep.subr.mxu0 0.0
    %253 = vmatpush1.msra.mxu0 0.0
    %254 = vmatprep.subr.mxu0 0.0
    %255 = vmatpush1.msra.mxu0 0.0
    %256 = vmatprep.subr.mxu0 0.0
    %257 = vmatpush1.msra.mxu0 0.0
    %258 = vmatprep.subr.mxu0 0.0
    %259 = vmatpush1.msra.mxu0 0.0
    %260 = vmatprep.subr.mxu0 0.0
    %261 = vmatpush1.msra.mxu0 0.0
    %262 = vmatprep.subr.mxu0 0.0
    %263 = vmatpush1.msra.mxu0 0.0
    %264 = vmatprep.subr.mxu0 0.0
    %265 = vmatpush1.msra.mxu0 0.0
    %266 = vmatprep.subr.mxu0 0.0
    %267 = vmatpush1.msra.mxu0 0.0
    %268 = vmatprep.subr.mxu0 0.0
    %269 = vmatpush1.msra.mxu0 0.0
    %270 = vmatprep.subr.mxu0 0.0
    %271 = vmatpush1.msra.mxu0 0.0
    %272 = vmatprep.subr.mxu0 0.0
    %v273 = vand.u32 %v81, 4294901760
    %v274 = vsub.f32 %v81, %v273
    %275 = vmatpush1.msra.mxu0 %v274
    %276 = vmatprep.subr.mxu0 0.0
    %v277 = vand.u32 %v80, 4294901760
    %v278 = vsub.f32 %v80, %v277
    %279 = vmatpush1.msra.mxu0 %v278
    %280 = vmatprep.subr.mxu0 0.0
    %281 = vmatpush2.msra.mxu0 0.0
    %282 = vmatprep.subr.mxu0 0.0
    %283 = vmatpush2.msra.mxu0 0.0
    %284 = vmatprep.subr.mxu0 0.0
    %285 = vmatpush2.msra.mxu0 0.0
    %286 = vmatprep.subr.mxu0 0.0
    %287 = vmatpush2.msra.mxu0 0.0
    %288 = vmatprep.subr.mxu0 0.0
    %289 = vmatpush2.msra.mxu0 0.0
    %290 = vmatprep.subr.mxu0 0.0
    %291 = vmatpush2.msra.mxu0 0.0
    %292 = vmatprep.subr.mxu0 0.0
    %293 = vmatpush2.msra.mxu0 0.0
    %294 = vmatprep.subr.mxu0 0.0
    %295 = vmatpush2.msra.mxu0 0.0
    %296 = vmatprep.subr.mxu0 0.0
    %297 = vmatpush2.msra.mxu0 0.0
    %298 = vmatprep.subr.mxu0 0.0
    %299 = vmatpush2.msra.mxu0 0.0
    %300 = vmatprep.subr.mxu0 0.0
    %301 = vmatpush2.msra.mxu0 0.0
    %302 = vmatprep.subr.mxu0 0.0
    %303 = vmatpush2.msra.mxu0 0.0
    %304 = vmatprep.subr.mxu0 0.0
    %305 = vmatpush2.msra.mxu0 0.0
    %306 = vmatprep.subr.mxu0 0.0
    %307 = vmatpush2.msra.mxu0 0.0
    %308 = vmatprep.subr.mxu0 0.0
    %309 = vmatpush2.msra.mxu0 0.0
    %310 = vmatprep.subr.mxu0 0.0
    %311 = vmatpush2.msra.mxu0 0.0
    %312 = vmatprep.mubr.f32.mxu0 0.0
    %v313 = vand.u32 %v84, 4294901760
    %v314 = vsub.f32 %v84, %v313
    %315 = vmatmul.mubr.f32.gmra.mxu0 %v314
    %v316 = vpop.f32.mrf.mxu0
    %v317 = vadd.f32 %v241, %v316
    %v318 = vpop.f32.mrf.mxu0
    %319 = vdwg.mxu0
    %320 = vmatprep.subr.mxu0 0.0
    %321 = vmatpush1.msra.mxu0 0.0
    %322 = vmatprep.subr.mxu0 0.0
    %323 = vmatpush1.msra.mxu0 0.0
    %324 = vmatprep.subr.mxu0 0.0
    %325 = vmatpush1.msra.mxu0 0.0
    %326 = vmatprep.subr.mxu0 0.0
    %327 = vmatpush1.msra.mxu0 0.0
    %328 = vmatprep.subr.mxu0 0.0
    %329 = vmatpush1.msra.mxu0 0.0
    %330 = vmatprep.subr.mxu0 0.0
    %331 = vmatpush1.msra.mxu0 0.0
    %332 = vmatprep.subr.mxu0 0.0
    %333 = vmatpush1.msra.mxu0 0.0
    %334 = vmatprep.subr.mxu0 0.0
    %335 = vmatpush1.msra.mxu0 0.0
    %336 = vmatprep.subr.mxu0 0.0
    %337 = vmatpush1.msra.mxu0 0.0
    %338 = vmatprep.subr.mxu0 0.0
    %339 = vmatpush1.msra.mxu0 0.0
    %340 = vmatprep.subr.mxu0 0.0
    %341 = vmatpush1.msra.mxu0 0.0
    %342 = vmatprep.subr.mxu0 0.0
    %343 = vmatpush1.msra.mxu0 0.0
    %344 = vmatprep.subr.mxu0 0.0
    %345 = vmatpush1.msra.mxu0 0.0
    %346 = vmatprep.subr.mxu0 0.0
    %347 = vmatpush1.msra.mxu0 0.0
    %348 = vmatprep.subr.mxu0 0.0
    %v349 = vand.u32 %v81, 4294901760
    %350 = vmatpush1.msra.mxu0 %v349
    %351 = vmatprep.subr.mxu0 0.0
    %v352 = vand.u32 %v80, 4294901760
    %353 = vmatpush1.msra.mxu0 %v352
    %354 = vmatprep.subr.mxu0 0.0
    %355 = vmatpush2.msra.mxu0 0.0
    %356 = vmatprep.subr.mxu0 0.0
    %357 = vmatpush2.msra.mxu0 0.0
    %358 = vmatprep.subr.mxu0 0.0
    %359 = vmatpush2.msra.mxu0 0.0
    %360 = vmatprep.subr.mxu0 0.0
    %361 = vmatpush2.msra.mxu0 0.0
    %362 = vmatprep.subr.mxu0 0.0
    %363 = vmatpush2.msra.mxu0 0.0
    %364 = vmatprep.subr.mxu0 0.0
    %365 = vmatpush2.msra.mxu0 0.0
    %366 = vmatprep.subr.mxu0 0.0
    %367 = vmatpush2.msra.mxu0 0.0
    %368 = vmatprep.subr.mxu0 0.0
    %369 = vmatpush2.msra.mxu0 0.0
    %370 = vmatprep.subr.mxu0 0.0
    %371 = vmatpush2.msra.mxu0 0.0
    %372 = vmatprep.subr.mxu0 0.0
    %373 = vmatpush2.msra.mxu0 0.0
    %374 = vmatprep.subr.mxu0 0.0
    %375 = vmatpush2.msra.mxu0 0.0
    %376 = vmatprep.subr.mxu0 0.0
    %377 = vmatpush2.msra.mxu0 0.0
    %378 = vmatprep.subr.mxu0 0.0
    %379 = vmatpush2.msra.mxu0 0.0
    %380 = vmatprep.subr.mxu0 0.0
    %381 = vmatpush2.msra.mxu0 0.0
    %382 = vmatprep.subr.mxu0 0.0
    %383 = vmatpush2.msra.mxu0 0.0
    %384 = vmatprep.subr.mxu0 0.0
    %385 = vmatpush2.msra.mxu0 0.0
    %386 = vmatprep.mubr.f32.mxu0 0.0
    %v387 = vand.u32 %v84, 4294901760
    %v388 = vsub.f32 %v84, %v387
    %v389 = vand.u32 %v388, 4294901760
    %390 = vmatmul.mubr.f32.gmra.mxu0 %v389
    %v391 = vpop.f32.mrf.mxu0
    %v392 = vadd.f32 %v317, %v391
    %v393 = vpop.f32.mrf.mxu0
    %394 = vdwg.mxu0
    %395 = vmatprep.subr.mxu0 0.0
    %396 = vmatpush1.msra.mxu0 0.0
    %397 = vmatprep.subr.mxu0 0.0
    %398 = vmatpush1.msra.mxu0 0.0
    %399 = vmatprep.subr.mxu0 0.0
    %400 = vmatpush1.msra.mxu0 0.0
    %401 = vmatprep.subr.mxu0 0.0
    %402 = vmatpush1.msra.mxu0 0.0
    %403 = vmatprep.subr.mxu0 0.0
    %404 = vmatpush1.msra.mxu0 0.0
    %405 = vmatprep.subr.mxu0 0.0
    %406 = vmatpush1.msra.mxu0 0.0
    %407 = vmatprep.subr.mxu0 0.0
    %408 = vmatpush1.msra.mxu0 0.0
    %409 = vmatprep.subr.mxu0 0.0
    %410 = vmatpush1.msra.mxu0 0.0
    %411 = vmatprep.subr.mxu0 0.0
    %412 = vmatpush1.msra.mxu0 0.0
    %413 = vmatprep.subr.mxu0 0.0
    %414 = vmatpush1.msra.mxu0 0.0
    %415 = vmatprep.subr.mxu0 0.0
    %416 = vmatpush1.msra.mxu0 0.0
    %417 = vmatprep.subr.mxu0 0.0
    %418 = vmatpush1.msra.mxu0 0.0
    %419 = vmatprep.subr.mxu0 0.0
    %420 = vmatpush1.msra.mxu0 0.0
    %421 = vmatprep.subr.mxu0 0.0
    %422 = vmatpush1.msra.mxu0 0.0
    %423 = vmatprep.subr.mxu0 0.0
    %v424 = vand.u32 %v81, 4294901760
    %v425 = vsub.f32 %v81, %v424
    %v426 = vand.u32 %v425, 4294901760
    %427 = vmatpush1.msra.mxu0 %v426
    %428 = vmatprep.subr.mxu0 0.0
    %v429 = vand.u32 %v80, 4294901760
    %v430 = vsub.f32 %v80, %v429
    %v431 = vand.u32 %v430, 4294901760
    %432 = vmatpush1.msra.mxu0 %v431
    %433 = vmatprep.subr.mxu0 0.0
    %434 = vmatpush2.msra.mxu0 0.0
    %435 = vmatprep.subr.mxu0 0.0
    %436 = vmatpush2.msra.mxu0 0.0
    %437 = vmatprep.subr.mxu0 0.0
    %438 = vmatpush2.msra.mxu0 0.0
    %439 = vmatprep.subr.mxu0 0.0
    %440 = vmatpush2.msra.mxu0 0.0
    %441 = vmatprep.subr.mxu0 0.0
    %442 = vmatpush2.msra.mxu0 0.0
    %443 = vmatprep.subr.mxu0 0.0
    %444 = vmatpush2.msra.mxu0 0.0
    %445 = vmatprep.subr.mxu0 0.0
    %446 = vmatpush2.msra.mxu0 0.0
    %447 = vmatprep.subr.mxu0 0.0
    %448 = vmatpush2.msra.mxu0 0.0
    %449 = vmatprep.subr.mxu0 0.0
    %450 = vmatpush2.msra.mxu0 0.0
    %451 = vmatprep.subr.mxu0 0.0
    %452 = vmatpush2.msra.mxu0 0.0
    %453 = vmatprep.subr.mxu0 0.0
    %454 = vmatpush2.msra.mxu0 0.0
    %455 = vmatprep.subr.mxu0 0.0
    %456 = vmatpush2.msra.mxu0 0.0
    %457 = vmatprep.subr.mxu0 0.0
    %458 = vmatpush2.msra.mxu0 0.0
    %459 = vmatprep.subr.mxu0 0.0
    %460 = vmatpush2.msra.mxu0 0.0
    %461 = vmatprep.subr.mxu0 0.0
    %462 = vmatpush2.msra.mxu0 0.0
    %463 = vmatprep.subr.mxu0 0.0
    %464 = vmatpush2.msra.mxu0 0.0
    %465 = vmatprep.mubr.f32.mxu0 0.0
    %v466 = vand.u32 %v84, 4294901760
    %467 = vmatmul.mubr.f32.gmra.mxu0 %v466
    %v468 = vpop.f32.mrf.mxu0
    %v469 = vadd.f32 %v392, %v468
    %v470 = vpop.f32.mrf.mxu0
    %471 = vdwg.mxu0
    %472 = vmatprep.subr.mxu0 0.0
    %473 = vmatpush1.msra.mxu0 0.0
    %474 = vmatprep.subr.mxu0 0.0
    %475 = vmatpush1.msra.mxu0 0.0
    %476 = vmatprep.subr.mxu0 0.0
    %477 = vmatpush1.msra.mxu0 0.0
    %478 = vmatprep.subr.mxu0 0.0
    %479 = vmatpush1.msra.mxu0 0.0
    %480 = vmatprep.subr.mxu0 0.0
    %481 = vmatpush1.msra.mxu0 0.0
    %482 = vmatprep.subr.mxu0 0.0
    %483 = vmatpush1.msra.mxu0 0.0
    %484 = vmatprep.subr.mxu0 0.0
    %485 = vmatpush1.msra.mxu0 0.0
    %486 = vmatprep.subr.mxu0 0.0
    %487 = vmatpush1.msra.mxu0 0.0
    %488 = vmatprep.subr.mxu0 0.0
    %489 = vmatpush1.msra.mxu0 0.0
    %490 = vmatprep.subr.mxu0 0.0
    %491 = vmatpush1.msra.mxu0 0.0
    %492 = vmatprep.subr.mxu0 0.0
    %493 = vmatpush1.msra.mxu0 0.0
    %494 = vmatprep.subr.mxu0 0.0
    %495 = vmatpush1.msra.mxu0 0.0
    %496 = vmatprep.subr.mxu0 0.0
    %497 = vmatpush1.msra.mxu0 0.0
    %498 = vmatprep.subr.mxu0 0.0
    %499 = vmatpush1.msra.mxu0 0.0
    %500 = vmatprep.subr.mxu0 0.0
    %v501 = vand.u32 %v81, 4294901760
    %502 = vmatpush1.msra.mxu0 %v501
    %503 = vmatprep.subr.mxu0 0.0
    %v504 = vand.u32 %v80, 4294901760
    %505 = vmatpush1.msra.mxu0 %v504
    %506 = vmatprep.subr.mxu0 0.0
    %507 = vmatpush2.msra.mxu0 0.0
    %508 = vmatprep.subr.mxu0 0.0
    %509 = vmatpush2.msra.mxu0 0.0
    %510 = vmatprep.subr.mxu0 0.0
    %511 = vmatpush2.msra.mxu0 0.0
    %512 = vmatprep.subr.mxu0 0.0
    %513 = vmatpush2.msra.mxu0 0.0
    %514 = vmatprep.subr.mxu0 0.0
    %515 = vmatpush2.msra.mxu0 0.0
    %516 = vmatprep.subr.mxu0 0.0
    %517 = vmatpush2.msra.mxu0 0.0
    %518 = vmatprep.subr.mxu0 0.0
    %519 = vmatpush2.msra.mxu0 0.0
    %520 = vmatprep.subr.mxu0 0.0
    %521 = vmatpush2.msra.mxu0 0.0
    %522 = vmatprep.subr.mxu0 0.0
    %523 = vmatpush2.msra.mxu0 0.0
    %524 = vmatprep.subr.mxu0 0.0
    %525 = vmatpush2.msra.mxu0 0.0
    %526 = vmatprep.subr.mxu0 0.0
    %527 = vmatpush2.msra.mxu0 0.0
    %528 = vmatprep.subr.mxu0 0.0
    %529 = vmatpush2.msra.mxu0 0.0
    %530 = vmatprep.subr.mxu0 0.0
    %531 = vmatpush2.msra.mxu0 0.0
    %532 = vmatprep.subr.mxu0 0.0
    %533 = vmatpush2.msra.mxu0 0.0
    %534 = vmatprep.subr.mxu0 0.0
    %535 = vmatpush2.msra.mxu0 0.0
    %536 = vmatprep.subr.mxu0 0.0
    %537 = vmatpush2.msra.mxu0 0.0
    %538 = vmatprep.mubr.f32.mxu0 0.0
    %v539 = vand.u32 %v84, 4294901760
    %540 = vmatmul.mubr.f32.gmra.mxu0 %v539
    %v541 = vpop.f32.mrf.mxu0
    %v542 = vadd.f32 %v469, %v541
    %v543 = vpop.f32.mrf.mxu0
    %544 = vdwg.mxu0
    %545 = vst [vmem:[#allocation7] sm:$0x1] %v542
    // Predicated region
    $region18: #{tpu_custom_call.1} parent=1 // pred_check
      _
    $region19: #{tpu_custom_call.1} parent=1 // pred_check_branch
      %547 = sbr.rel (0) target = $region21
    $region20: #{tpu_custom_call.1} parent=1 // pred_region
      %s549 = ssub.s32 16, 16
      %550 = vsyncadd [#allocation4], %s549
      %s552 = sshll.u32 [#allocation7], 4
      %s553 = int_to_ptr.vmem [resolvable:$true] %s552
      %555 = dma.vmem_to_hbm [thread:$0]  %s553, 16, %s2, [#allocation4]
    $region21: #{tpu_custom_call.1} parent=1 // pred_fallthru
      _
    // Predicated region
    $region22: #{tpu_custom_call.1} parent=1 // pred_check
      _
    $region23: #{tpu_custom_call.1} parent=1 // pred_check_branch
      %557 = sbr.rel (0) target = $region25
    $region24: #{tpu_custom_call.1} parent=1 // pred_region
      %558 = dma.done [#allocation4], 16
    $region25: #{tpu_custom_call.1} parent=1 // pred_fallthru
      _
    %559 = vsyncpa [#allocation3], 1
    %560 = vsyncpa [#allocation6], 1
    %561 = vsyncpa [#allocation4], 1

</llo_original>
